<compile_context>
chip_gen: v7x
topology: tpu7x:2x2x1
jax: 0.10.0
libtpu: 0.0.40
codegen_flags: <defaults>
</compile_context>

<pallas_src>
import jax
import jax.numpy as jnp
from jax import lax
from jax.experimental import pallas as pl
from jax.experimental.pallas import tpu as pltpu


# --------------------------------------------------------------------------
# helpers
# --------------------------------------------------------------------------
def _round_up(x, m):
    return (x + m - 1) // m * m


def _pick_tile(n_items_p, tile_items):
    """Largest tile (multiple of 256, dividing n_items_p, <= tile_items) that
    keeps grid >= 4 (else >= 2, else any); prefer an even grid length."""
    cap = max(256, min(int(tile_items), n_items_p))
    divs = [t for t in range(256, n_items_p + 1, 256) if n_items_p % t == 0]
    for min_grid in (4, 2, 1):
        ok = [t for t in divs if t <= cap and n_items_p // t >= min_grid]
        if ok:
            even = [t for t in ok if (n_items_p // t) % 2 == 0]
            return (even or ok)[-1]
    return 256


# --------------------------------------------------------------------------
# one-time preparation (hoisted out of the per-call path)
# --------------------------------------------------------------------------
def prepare_item_table(item_weight, *, align=256):
    """Do ONCE: pad n_items to a multiple of `align`, transpose to [H, n_items_p],
    cast to bf16.  Returns (table_bf16 [H, n_items_p], n_items)."""
    n_items, _ = item_weight.shape
    n_items_p = _round_up(n_items, align)
    tbl = jnp.pad(item_weight, ((0, n_items_p - n_items), (0, 0))).T
    return jnp.asarray(tbl, jnp.bfloat16), n_items


def prepare_params(params):
    """Do ONCE: cast MXU weight operands to bf16, keep biases f32."""
    return {
        "w1_t": jnp.asarray(params["w1_t"], jnp.bfloat16),
        "w2_t": jnp.asarray(params["w2_t"], jnp.bfloat16),
        "w3a_t": jnp.asarray(params["w3a_t"], jnp.bfloat16),
        "w3b_t": jnp.asarray(params["w3b_t"], jnp.bfloat16),
        "b12": jnp.asarray(params["b1"] + params["b2"], jnp.float32),   # [1, H]
        "b3": jnp.asarray(params["b3"], jnp.float32),                   # [1, H]
        "q_row": jnp.asarray(params["q_t"].T, jnp.float32),             # [1, H]
        "bq": jnp.asarray(params["bq"]).reshape(1, 1).astype(jnp.float32),
    }


# --------------------------------------------------------------------------
# kernel 1: attention + segment sum + W3  ->  s_h  [B, H] (bf16)
# --------------------------------------------------------------------------
def _prelude_kernel(sess_ref, vnr_ref, seg_ref, vn_ref,
                    w1_ref, w2_ref, b12_ref, q_ref, bq_ref,
                    w3a_ref, w3b_ref, b3_ref, s_h_ref):
    sess = sess_ref[...]                                   # [N, H] bf16
    vnr = vnr_ref[...]                                     # [N, H] bf16

    # h = W1(v_n_repeat) + W2(session_embedding)   (f32 accumulation on MXU)
    h = (jnp.dot(vnr, w1_ref[...], preferred_element_type=jnp.float32)
         + jnp.dot(sess, w2_ref[...], preferred_element_type=jnp.float32)
         + b12_ref[...])                                   # [N, H] f32

    # alpha = q(sigmoid(h)): width-1 projection as VPU multiply + lane reduce
    alpha = (jnp.sum(jax.nn.sigmoid(h) * q_ref[...], axis=-1, keepdims=True)
             + bq_ref[...])                                # [N, 1] f32

    # per-session sum of alpha * session_embedding via the [B, N]
    # segment-assignment matmul (batch sorted / sessions contiguous).
    s_g_whole = (alpha * sess.astype(jnp.float32)).astype(jnp.bfloat16)
    s_g = jnp.dot(seg_ref[...], s_g_whole,
                  preferred_element_type=jnp.float32)      # [B, H] f32

    # s_h = W3([v_n | s_g])  (W3 split into its v_n half and s_g half)
    s_h = (jnp.dot(vn_ref[...], w3a_ref[...], preferred_element_type=jnp.float32)
           + jnp.dot(s_g.astype(jnp.bfloat16), w3b_ref[...],
                     preferred_element_type=jnp.float32)
           + b3_ref[...])                                  # [B, H] f32
    s_h_ref[...] = s_h.astype(jnp.bfloat16)


# --------------------------------------------------------------------------
# kernel 2: streamed scoring matmul   z = s_h @ item_table   (table = [H, items])
# --------------------------------------------------------------------------
def _score_kernel(s_h_ref, item_ref, out_ref):
    # [B, H] bf16 @ [H, TILE] bf16 -> [B, TILE] f32 acc, cast to out dtype.
    out_ref[...] = jnp.dot(
        s_h_ref[...], item_ref[...],
        preferred_element_type=jnp.float32).astype(out_ref.dtype)


# --------------------------------------------------------------------------
# wrapper
# --------------------------------------------------------------------------
def embedding2score_pallas(session_embedding, item_table, batch, prep_params,
                           *, num_sessions, n_items=None, tile_items=2048,
                           out_dtype=jnp.float32, return_padded=False):
    """session_embedding: [N,H] f32, item_table: [H, n_items_p] bf16 from
    prepare_item_table, batch: [N] i32 sorted session ids, prep_params from
    prepare_params, num_sessions: static int B."""
    N, H = session_embedding.shape
    Ht, n_items_p = item_table.shape
    assert Ht == H, "item_table must be the [H, n_items_p] prepared table"
    if n_items is None:
        n_items = n_items_p
    B = int(num_sessions)                    # static -> no device->host sync

    # ---- data-dependent indexing glue (plain JAX; batch must be sorted) ----
    sections = jnp.bincount(batch, length=B)
    last_idx = jnp.cumsum(sections) - 1
    v_n = session_embedding[last_idx]                       # [B, H]
    v_n_repeat = v_n[batch]                                 # [N, H]
    # [B, N] segment-assignment matrix built directly (no one_hot().T round-trip)
    seg = (lax.broadcasted_iota(jnp.int32, (B, N), 0)
           == batch[None, :]).astype(jnp.bfloat16)

    sess_b = session_embedding.astype(jnp.bfloat16)
    vnr_b = v_n_repeat.astype(jnp.bfloat16)
    vn_b = v_n.astype(jnp.bfloat16)

    # ---- kernel 1: tiny prelude, everything resident in VMEM ----
    vmem = pl.BlockSpec(memory_space=pltpu.MemorySpace.VMEM)
    s_h = pl.pallas_call(
        _prelude_kernel,
        out_shape=jax.ShapeDtypeStruct((B, H), jnp.bfloat16),
        in_specs=[vmem] * 12,
        out_specs=vmem,
    )(sess_b, vnr_b, seg, vn_b,
      prep_params["w1_t"], prep_params["w2_t"], prep_params["b12"],
      prep_params["q_row"], prep_params["bq"],
      prep_params["w3a_t"], prep_params["w3b_t"], prep_params["b3"])

    # ---- kernel 2: scoring matmul streamed over item tiles ----
    tile = _pick_tile(n_items_p, tile_items)
    grid = (n_items_p // tile,)
    out_bytes = jnp.dtype(out_dtype).itemsize

    # Exact double-buffer VMEM need + headroom (safe for v7x's 64 MiB/TC too).
    vmem_need = (2 * H * tile * 2            # bf16 item tile, double-buffered
                 + 2 * B * tile * out_bytes  # output tile, double-buffered
                 + 2 * B * H * 2)            # resident s_h
    vmem_limit = int(min(max(vmem_need + (2 << 20), 4 << 20), 48 << 20))

    cost = pl.CostEstimate(
        flops=2 * B * n_items_p * H,
        transcendentals=0,
        bytes_accessed=(n_items_p * H * 2          # bf16 table stream
                        + B * H * 2                # s_h
                        + B * n_items_p * out_bytes))

    out = pl.pallas_call(
        _score_kernel,
        out_shape=jax.ShapeDtypeStruct((B, n_items_p), out_dtype),
        grid_spec=pltpu.PrefetchScalarGridSpec(
            num_scalar_prefetch=0,
            grid=grid,
            in_specs=[
                pl.BlockSpec((B, H), lambda i: (0, 0)),      # s_h: loaded once
                pl.BlockSpec((H, tile), lambda i: (0, i)),   # item tile: streamed
            ],
            out_specs=pl.BlockSpec((B, tile), lambda i: (0, i)),
        ),
        compiler_params=pltpu.CompilerParams(
            dimension_semantics=("parallel",),   # independent item tiles -> megacore
            vmem_limit_bytes=vmem_limit,
        ),
        cost_estimate=cost,
    )(s_h, item_table)

    if return_padded or n_items_p == n_items:
        return out          # padded columns (if any) score garbage/0 -> caller masks
    return out[:, :n_items]


# --------------------------------------------------------------------------
# reference + demo
# --------------------------------------------------------------------------
def _linear_params(key, fan_in, fan_out):
    # deterministic analogue of nn.Linear default init (uniform +-1/sqrt(fan_in))
    kw, kb = jax.random.split(key)
    bound = 1.0 / (fan_in ** 0.5)
    w_t = jax.random.uniform(kw, (fan_in, fan_out), jnp.float32, -bound, bound)
    b = jax.random.uniform(kb, (1, fan_out), jnp.float32, -bound, bound)
    return w_t, b


def _reference(session_embedding, item_weight, batch, params, num_sessions):
    B = int(num_sessions)
    sections = jnp.bincount(batch, length=B)
    last_idx = jnp.cumsum(sections) - 1
    v_n = session_embedding[last_idx]
    v_n_repeat = v_n[batch]
    h = (v_n_repeat @ params["w1_t"] + params["b1"]
         + session_embedding @ params["w2_t"] + params["b2"])
    alpha = jax.nn.sigmoid(h) @ params["q_t"] + params["bq"]
    s_g_whole = alpha * session_embedding
    s_g = jax.ops.segment_sum(s_g_whole, batch, num_segments=B)
    s_h = v_n @ params["w3a_t"] + s_g @ params["w3b_t"] + params["b3"]
    return s_h @ item_weight.T


if __name__ == "__main__":
    H = 32            # hidden_size
    n_items = 512     # item vocabulary (small demo size)
    # two sessions: 5 nodes + 3 nodes (batch sorted, sessions contiguous)
    batch = jnp.array([0, 0, 0, 0, 0, 1, 1, 1], dtype=jnp.int32)
    N = batch.shape[0]
    B = 2

    key = jax.random.PRNGKey(0)
    ks = jax.random.split(key, 6)

    w1_t, b1 = _linear_params(ks[0], H, H)
    w2_t, b2 = _linear_params(ks[1], H, H)
    q_t, bq = _linear_params(ks[2], H, 1)
    w3_t, b3 = _linear_params(ks[3], 2 * H, H)
    params = {
        "w1_t": w1_t, "b1": b1,
        "w2_t": w2_t, "b2": b2,
        "q_t": q_t, "bq": bq,
        "w3a_t": w3_t[:H, :], "w3b_t": w3_t[H:, :], "b3": b3,
    }

    session_embedding = jax.random.normal(ks[4], (N, H), jnp.float32)
    item_weight = jax.random.normal(ks[5], (n_items, H), jnp.float32)  # nn.Embedding weight

    # one-time preparation (hoisted out of the per-call path)
    item_table, n_items_real = prepare_item_table(item_weight)
    prep_params = prepare_params(params)

    z = embedding2score_pallas(session_embedding, item_table, batch, prep_params,
                               num_sessions=B, n_items=n_items_real,
                               tile_items=2048)
    z = jax.block_until_ready(z)

    z_ref = _reference(session_embedding, item_weight, batch, params, B)
    assert z.shape == (B, n_items)
    # bf16 MXU operands with f32 accumulation -> compare with a scale-aware bound
    rel_err = float(jnp.max(jnp.abs(z - z_ref)) / (jnp.max(jnp.abs(z_ref)) + 1e-6))
    assert rel_err < 5e-2, f"max relative error too large: {rel_err}"

    print("KERNEL_OK")
</pallas_src>

<mosaic_0001>
module attributes {stable_mosaic.version = 11 : i64} {
  func.func @_prelude_kernel(%arg0: memref<8x32xbf16, #tpu.memory_space<vmem>>, %arg1: memref<8x32xbf16, #tpu.memory_space<vmem>>, %arg2: memref<2x8xbf16, #tpu.memory_space<vmem>>, %arg3: memref<2x32xbf16, #tpu.memory_space<vmem>>, %arg4: memref<32x32xbf16, #tpu.memory_space<vmem>>, %arg5: memref<32x32xbf16, #tpu.memory_space<vmem>>, %arg6: memref<1x32xf32, #tpu.memory_space<vmem>>, %arg7: memref<1x32xf32, #tpu.memory_space<vmem>>, %arg8: memref<1x1xf32, #tpu.memory_space<vmem>>, %arg9: memref<32x32xbf16, #tpu.memory_space<vmem>>, %arg10: memref<32x32xbf16, #tpu.memory_space<vmem>>, %arg11: memref<1x32xf32, #tpu.memory_space<vmem>>, %arg12: memref<2x32xbf16, #tpu.memory_space<vmem>>) attributes {dimension_semantics = [], scalar_prefetch = 0 : i64, scratch_operands = 0 : i64, tpu.core_type = #tpu.core_type<tc>} {
    %c0 = arith.constant 0 : index
    %c0_0 = arith.constant 0 : index
    %0 = vector.load %arg0[%c0, %c0_0] : memref<8x32xbf16, #tpu.memory_space<vmem>>, vector<8x32xbf16>
    %c0_1 = arith.constant 0 : index
    %c0_2 = arith.constant 0 : index
    %1 = vector.load %arg1[%c0_1, %c0_2] : memref<8x32xbf16, #tpu.memory_space<vmem>>, vector<8x32xbf16>
    %c0_3 = arith.constant 0 : index
    %c0_4 = arith.constant 0 : index
    %2 = vector.load %arg4[%c0_3, %c0_4] : memref<32x32xbf16, #tpu.memory_space<vmem>>, vector<32x32xbf16>
    %cst = arith.constant dense<0.000000e+00> : vector<8x32xf32>
    %3 = tpu.matmul %1, %2, %cst {dimension_numbers = #tpu.dot_dimension_numbers<[1], [0], [0], [1], [0, 0, 1, 1], [], []>} : vector<8x32xbf16>, vector<32x32xbf16>, vector<8x32xf32> -> vector<8x32xf32>
    %c0_5 = arith.constant 0 : index
    %c0_6 = arith.constant 0 : index
    %4 = vector.load %arg5[%c0_5, %c0_6] : memref<32x32xbf16, #tpu.memory_space<vmem>>, vector<32x32xbf16>
    %cst_7 = arith.constant dense<0.000000e+00> : vector<8x32xf32>
    %5 = tpu.matmul %0, %4, %cst_7 {dimension_numbers = #tpu.dot_dimension_numbers<[1], [0], [0], [1], [0, 0, 1, 1], [], []>} : vector<8x32xbf16>, vector<32x32xbf16>, vector<8x32xf32> -> vector<8x32xf32>
    %6 = arith.addf %3, %5 : vector<8x32xf32>
    %c0_8 = arith.constant 0 : index
    %c0_9 = arith.constant 0 : index
    %7 = vector.load %arg6[%c0_8, %c0_9] : memref<1x32xf32, #tpu.memory_space<vmem>>, vector<1x32xf32>
    %8 = vector.broadcast %7 : vector<1x32xf32> to vector<8x32xf32>
    %9 = arith.addf %6, %8 : vector<8x32xf32>
    %10 = arith.negf %9 : vector<8x32xf32>
    %11 = math.exp %10 : vector<8x32xf32>
    %cst_10 = arith.constant 1.000000e+00 : f32
    %12 = vector.broadcast %cst_10 : f32 to vector<8x32xf32>
    %13 = arith.addf %12, %11 : vector<8x32xf32>
    %14 = arith.divf %12, %13 : vector<8x32xf32>
    %c0_11 = arith.constant 0 : index
    %c0_12 = arith.constant 0 : index
    %15 = vector.load %arg7[%c0_11, %c0_12] : memref<1x32xf32, #tpu.memory_space<vmem>>, vector<1x32xf32>
    %16 = vector.broadcast %15 : vector<1x32xf32> to vector<8x32xf32>
    %17 = arith.mulf %14, %16 : vector<8x32xf32>
    %cst_13 = arith.constant dense<0.000000e+00> : vector<8xf32>
    %18 = vector.multi_reduction <add>, %17, %cst_13 [1] : vector<8x32xf32> to vector<8xf32>
    %19 = vector.shape_cast %18 : vector<8xf32> to vector<8x1xf32>
    %c0_14 = arith.constant 0 : index
    %c0_15 = arith.constant 0 : index
    %20 = vector.load %arg8[%c0_14, %c0_15] : memref<1x1xf32, #tpu.memory_space<vmem>>, vector<1x1xf32>
    %21 = vector.broadcast %20 : vector<1x1xf32> to vector<8x1xf32>
    %22 = arith.addf %19, %21 : vector<8x1xf32>
    %23 = arith.extf %0 : vector<8x32xbf16> to vector<8x32xf32>
    %24 = vector.broadcast %22 : vector<8x1xf32> to vector<8x32xf32>
    %25 = arith.mulf %24, %23 : vector<8x32xf32>
    %26 = arith.truncf %25 : vector<8x32xf32> to vector<8x32xbf16>
    %c0_16 = arith.constant 0 : index
    %c0_17 = arith.constant 0 : index
    %27 = vector.load %arg2[%c0_16, %c0_17] : memref<2x8xbf16, #tpu.memory_space<vmem>>, vector<2x8xbf16>
    %cst_18 = arith.constant dense<0.000000e+00> : vector<2x32xf32>
    %28 = tpu.matmul %27, %26, %cst_18 {dimension_numbers = #tpu.dot_dimension_numbers<[1], [0], [0], [1], [0, 0, 1, 1], [], []>} : vector<2x8xbf16>, vector<8x32xbf16>, vector<2x32xf32> -> vector<2x32xf32>
    %c0_19 = arith.constant 0 : index
    %c0_20 = arith.constant 0 : index
    %29 = vector.load %arg3[%c0_19, %c0_20] : memref<2x32xbf16, #tpu.memory_space<vmem>>, vector<2x32xbf16>
    %c0_21 = arith.constant 0 : index
    %c0_22 = arith.constant 0 : index
    %30 = vector.load %arg9[%c0_21, %c0_22] : memref<32x32xbf16, #tpu.memory_space<vmem>>, vector<32x32xbf16>
    %cst_23 = arith.constant dense<0.000000e+00> : vector<2x32xf32>
    %31 = tpu.matmul %29, %30, %cst_23 {dimension_numbers = #tpu.dot_dimension_numbers<[1], [0], [0], [1], [0, 0, 1, 1], [], []>} : vector<2x32xbf16>, vector<32x32xbf16>, vector<2x32xf32> -> vector<2x32xf32>
    %32 = arith.truncf %28 : vector<2x32xf32> to vector<2x32xbf16>
    %c0_24 = arith.constant 0 : index
    %c0_25 = arith.constant 0 : index
    %33 = vector.load %arg10[%c0_24, %c0_25] : memref<32x32xbf16, #tpu.memory_space<vmem>>, vector<32x32xbf16>
    %cst_26 = arith.constant dense<0.000000e+00> : vector<2x32xf32>
    %34 = tpu.matmul %32, %33, %cst_26 {dimension_numbers = #tpu.dot_dimension_numbers<[1], [0], [0], [1], [0, 0, 1, 1], [], []>} : vector<2x32xbf16>, vector<32x32xbf16>, vector<2x32xf32> -> vector<2x32xf32>
    %35 = arith.addf %31, %34 : vector<2x32xf32>
    %c0_27 = arith.constant 0 : index
    %c0_28 = arith.constant 0 : index
    %36 = vector.load %arg11[%c0_27, %c0_28] : memref<1x32xf32, #tpu.memory_space<vmem>>, vector<1x32xf32>
    %37 = vector.broadcast %36 : vector<1x32xf32> to vector<2x32xf32>
    %38 = arith.addf %35, %37 : vector<2x32xf32>
    %39 = arith.truncf %38 : vector<2x32xf32> to vector<2x32xbf16>
    %c0_29 = arith.constant 0 : index
    %c0_30 = arith.constant 0 : index
    %40 = vector.load %arg12[%c0_29, %c0_30] : memref<2x32xbf16, #tpu.memory_space<vmem>>, vector<2x32xbf16>
    tpu.vector_store %arg12[%c0_29, %c0_30], %39 {strides = array<i32>} : memref<2x32xbf16, #tpu.memory_space<vmem>>, vector<2x32xbf16>,
    return
  }
}

</mosaic_0001>

<llo_original>
// kernel: tpu_custom_call.1
$region0: #{tpu_custom_call.1}
  #allocation0 [shape = 'u32[]', space=smem, size = 0x4, offset = 0x4, fixed_abs, tag = 'smem constant byte address 0x4 - core index']
  #allocation1 [shape = 'u32[144,128]{1,0:T(1,128)}', space=vmem, size = 0x12000, scoped, tag = 'internal scratch']
  #allocation2 [shape = 'f32[1,1]{1,0:T(1,128)S(1)}', space=vmem, size = 0x200, scoped, tag = 'scoped memory for tpu_custom_call.1']
  %s0 = inlined_call_operand.hbm [shape: bf16[8,32], index: 0, kind: input, shape index: {}]
  %s1 = inlined_call_operand.hbm [shape: bf16[8,32], index: 1, kind: input, shape index: {}]
  %s2 = inlined_call_operand.vmem [shape: bf16[2,8], index: 2, kind: input, shape index: {}]
  %s3 = inlined_call_operand.vmem [shape: bf16[2,32], index: 3, kind: input, shape index: {}]
  %s4 = inlined_call_operand.vmem [shape: bf16[32,32], index: 4, kind: input, shape index: {}]
  %s5 = inlined_call_operand.hbm [shape: bf16[32,32], index: 5, kind: input, shape index: {}]
  %s6 = inlined_call_operand.hbm [shape: f32[1,32], index: 6, kind: input, shape index: {}]
  %s7 = inlined_call_operand.hbm [shape: f32[1,32], index: 7, kind: input, shape index: {}]
  %s8 = inlined_call_operand.<no memory space> [shape: f32[1,1], index: 8, kind: input, shape index: {}]
  %s9 = inlined_call_operand.vmem [shape: bf16[32,32], index: 9, kind: input, shape index: {}]
  %s10 = inlined_call_operand.hbm [shape: bf16[32,32], index: 10, kind: input, shape index: {}]
  %s11 = inlined_call_operand.vmem [shape: f32[1,32], index: 11, kind: input, shape index: {}]
  %s12 = inlined_call_operand.hbm [shape: bf16[2,32], index: 12, kind: output, shape index: {}]
  %s13 = sld [smem:[#allocation0]]
  $region82: #{tpu_custom_call.1} parent=0
    _
  %s15 = ssub.s32 1, %s13
  %s16 = scalar_select 0, %s15, %s13
  %v17 = vstv %s8
  %18 = vst [vmem:[#allocation2] sm:$0x1] %v17
  $region1: #{tpu_custom_call.1} parent=0
    #allocation3 [shape = 'u8[2048]{0}', space=vmem, size = 0x800, scoped, tag = 'input window, operand 0, single buffered']
    #allocation4 [shape = 's32[1]{0}', space=sflag, size = 0x4, scoped, tag = 'scoped memory for tpu_custom_call.1']
    #allocation5 [shape = 's32[1]{0}', space=sflag, size = 0x4, scoped, tag = 'scoped memory for tpu_custom_call.1']
    #allocation6 [shape = 'u8[2048]{0}', space=vmem, size = 0x800, scoped, tag = 'input window, operand 1, single buffered']
    #allocation7 [shape = 's32[1]{0}', space=sflag, size = 0x4, scoped, tag = 'scoped memory for tpu_custom_call.1']
    #allocation8 [shape = 'u8[8192]{0}', space=vmem, size = 0x2000, scoped, tag = 'input window, operand 5, single buffered']
    #allocation9 [shape = 'u8[512]{0}', space=vmem, size = 0x400, scoped, tag = 'input window, operand 6, single buffered']
    #allocation10 [shape = 's32[1]{0}', space=sflag, size = 0x4, scoped, tag = 'scoped memory for tpu_custom_call.1']
    #allocation11 [shape = 'u8[512]{0}', space=vmem, size = 0x400, scoped, tag = 'input window, operand 7, single buffered']
    #allocation12 [shape = 'u8[8192]{0}', space=vmem, size = 0x2000, scoped, tag = 'input window, operand 10, single buffered']
    #allocation13 [shape = 's32[1]{0}', space=sflag, size = 0x4, scoped, tag = 'scoped memory for tpu_custom_call.1']
    #allocation14 [shape = 'u8[512]{0}', space=vmem, size = 0x400, scoped, tag = 'output window, operand 0, single buffered']
    %19 = vsyncpa [#allocation4], 0
    %20 = vsyncpa [#allocation7], 0
    %21 = vsyncpa [#allocation10], 0
    %22 = vsyncpa [#allocation13], 0
    %23 = vsyncpa [#allocation5], 0
    // Predicated region
    $region2: #{tpu_custom_call.1} parent=1 // pred_check
      _
    $region3: #{tpu_custom_call.1} parent=1 // pred_check_branch
      %25 = sbr.rel (0) target = $region5
    $region4: #{tpu_custom_call.1} parent=1 // pred_region
      %s27 = ssub.s32 64, 64
      %28 = vsyncadd [#allocation4], %s27
      %s30 = sshll.u32 [#allocation3], 4
      %s31 = int_to_ptr.vmem [resolvable:$true] %s30
      %33 = dma.hbm_to_vmem [thread:$0]  %s0, 64, %s31, [#allocation4]
    $region5: #{tpu_custom_call.1} parent=1 // pred_fallthru
      _
    // Predicated region
    $region6: #{tpu_custom_call.1} parent=1 // pred_check
      _
    $region7: #{tpu_custom_call.1} parent=1 // pred_check_branch
      %35 = sbr.rel (0) target = $region9
    $region8: #{tpu_custom_call.1} parent=1 // pred_region
      %s37 = ssub.s32 64, 64
      %38 = vsyncadd [#allocation7], %s37
      %s40 = sshll.u32 [#allocation6], 4
      %s41 = int_to_ptr.vmem [resolvable:$true] %s40
      %43 = dma.hbm_to_vmem [thread:$0]  %s1, 64, %s41, [#allocation7]
    $region9: #{tpu_custom_call.1} parent=1 // pred_fallthru
      _
    // Predicated region
    $region10: #{tpu_custom_call.1} parent=1 // pred_check
      _
    $region11: #{tpu_custom_call.1} parent=1 // pred_check_branch
      %45 = sbr.rel (0) target = $region13
    $region12: #{tpu_custom_call.1} parent=1 // pred_region
      _
    $region13: #{tpu_custom_call.1} parent=1 // pred_fallthru
      _
    // Predicated region
    $region14: #{tpu_custom_call.1} parent=1 // pred_check
      _
    $region15: #{tpu_custom_call.1} parent=1 // pred_check_branch
      %47 = sbr.rel (0) target = $region17
    $region16: #{tpu_custom_call.1} parent=1 // pred_region
      _
    $region17: #{tpu_custom_call.1} parent=1 // pred_fallthru
      _
    // Predicated region
    $region18: #{tpu_custom_call.1} parent=1 // pred_check
      _
    $region19: #{tpu_custom_call.1} parent=1 // pred_check_branch
      %49 = sbr.rel (0) target = $region21
    $region20: #{tpu_custom_call.1} parent=1 // pred_region
      _
    $region21: #{tpu_custom_call.1} parent=1 // pred_fallthru
      _
    // Predicated region
    $region22: #{tpu_custom_call.1} parent=1 // pred_check
      _
    $region23: #{tpu_custom_call.1} parent=1 // pred_check_branch
      %51 = sbr.rel (0) target = $region25
    $region24: #{tpu_custom_call.1} parent=1 // pred_region
      %s53 = ssub.s32 256, 256
      %54 = vsyncadd [#allocation7], %s53
      %s55 = sshll.u32 [#allocation8], 4
      %s56 = int_to_ptr.vmem [resolvable:$true] %s55
      %61 = dma.hbm_to_vmem [thread:$0]  %s5, 256, %s56, [#allocation7], 64, 64, 4
    $region25: #{tpu_custom_call.1} parent=1 // pred_fallthru
      _
    // Predicated region
    $region26: #{tpu_custom_call.1} parent=1 // pred_check
      _
    $region27: #{tpu_custom_call.1} parent=1 // pred_check_branch
      %63 = sbr.rel (0) target = $region29
    $region28: #{tpu_custom_call.1} parent=1 // pred_region
      %s65 = ssub.s32 16, 16
      %66 = vsyncadd [#allocation10], %s65
      %s68 = sshll.u32 [#allocation9], 4
      %s69 = int_to_ptr.vmem [resolvable:$true] %s68
      %71 = dma.hbm_to_vmem [thread:$0]  %s6, 16, %s69, [#allocation10]
    $region29: #{tpu_custom_call.1} parent=1 // pred_fallthru
      _
    // Predicated region
    $region30: #{tpu_custom_call.1} parent=1 // pred_check
      _
    $region31: #{tpu_custom_call.1} parent=1 // pred_check_branch
      %73 = sbr.rel (0) target = $region33
    $region32: #{tpu_custom_call.1} parent=1 // pred_region
      %s75 = ssub.s32 16, 16
      %76 = vsyncadd [#allocation10], %s75
      %s78 = sshll.u32 [#allocation11], 4
      %s79 = int_to_ptr.vmem [resolvable:$true] %s78
      %81 = dma.hbm_to_vmem [thread:$0]  %s7, 16, %s79, [#allocation10]
    $region33: #{tpu_custom_call.1} parent=1 // pred_fallthru
      _
    // Predicated region
    $region34: #{tpu_custom_call.1} parent=1 // pred_check
      _
    $region35: #{tpu_custom_call.1} parent=1 // pred_check_branch
      %83 = sbr.rel (0) target = $region37
    $region36: #{tpu_custom_call.1} parent=1 // pred_region
      _
    $region37: #{tpu_custom_call.1} parent=1 // pred_fallthru
      _
    // Predicated region
    $region38: #{tpu_custom_call.1} parent=1 // pred_check
      _
    $region39: #{tpu_custom_call.1} parent=1 // pred_check_branch
      %85 = sbr.rel (0) target = $region41
    $region40: #{tpu_custom_call.1} parent=1 // pred_region
      _
    $region41: #{tpu_custom_call.1} parent=1 // pred_fallthru
      _
    // Predicated region
    $region42: #{tpu_custom_call.1} parent=1 // pred_check
      _
    $region43: #{tpu_custom_call.1} parent=1 // pred_check_branch
      %87 = sbr.rel (0) target = $region45
    $region44: #{tpu_custom_call.1} parent=1 // pred_region
      %s89 = ssub.s32 256, 256
      %90 = vsyncadd [#allocation13], %s89
      %s91 = sshll.u32 [#allocation12], 4
      %s92 = int_to_ptr.vmem [resolvable:$true] %s91
      %97 = dma.hbm_to_vmem [thread:$0]  %s10, 256, %s92, [#allocation13], 64, 64, 4
    $region45: #{tpu_custom_call.1} parent=1 // pred_fallthru
      _
    // Predicated region
    $region46: #{tpu_custom_call.1} parent=1 // pred_check
      _
    $region47: #{tpu_custom_call.1} parent=1 // pred_check_branch
      %99 = sbr.rel (0) target = $region49
    $region48: #{tpu_custom_call.1} parent=1 // pred_region
      _
    $region49: #{tpu_custom_call.1} parent=1 // pred_fallthru
      _
    // Predicated region
    $region50: #{tpu_custom_call.1} parent=1 // pred_check
      _
    $region51: #{tpu_custom_call.1} parent=1 // pred_check_branch
      %101 = sbr.rel (0) target = $region53
    $region52: #{tpu_custom_call.1} parent=1 // pred_region
      %102 = dma.done [#allocation4], 64
    $region53: #{tpu_custom_call.1} parent=1 // pred_fallthru
      _
    // Predicated region
    $region54: #{tpu_custom_call.1} parent=1 // pred_check
      _
    $region55: #{tpu_custom_call.1} parent=1 // pred_check_branch
      %104 = sbr.rel (0) target = $region57
    $region56: #{tpu_custom_call.1} parent=1 // pred_region
      %105 = dma.done [#allocation7], 64
    $region57: #{tpu_custom_call.1} parent=1 // pred_fallthru
      _
    // Predicated region
    $region58: #{tpu_custom_call.1} parent=1 // pred_check
      _
    $region59: #{tpu_custom_call.1} parent=1 // pred_check_branch
      %107 = sbr.rel (0) target = $region61
    $region60: #{tpu_custom_call.1} parent=1 // pred_region
      %108 = dma.done [#allocation7], 256
    $region61: #{tpu_custom_call.1} parent=1 // pred_fallthru
      _
    // Predicated region
    $region62: #{tpu_custom_call.1} parent=1 // pred_check
      _
    $region63: #{tpu_custom_call.1} parent=1 // pred_check_branch
      %110 = sbr.rel (0) target = $region65
    $region64: #{tpu_custom_call.1} parent=1 // pred_region
      %111 = dma.done [#allocation10], 16
    $region65: #{tpu_custom_call.1} parent=1 // pred_fallthru
      _
    // Predicated region
    $region66: #{tpu_custom_call.1} parent=1 // pred_check
      _
    $region67: #{tpu_custom_call.1} parent=1 // pred_check_branch
      %113 = sbr.rel (0) target = $region69
    $region68: #{tpu_custom_call.1} parent=1 // pred_region
      %114 = dma.done [#allocation10], 16
    $region69: #{tpu_custom_call.1} parent=1 // pred_fallthru
      _
    // Predicated region
    $region70: #{tpu_custom_call.1} parent=1 // pred_check
      _
    $region71: #{tpu_custom_call.1} parent=1 // pred_check_branch
      %116 = sbr.rel (0) target = $region73
    $region72: #{tpu_custom_call.1} parent=1 // pred_region
      %117 = dma.done [#allocation13], 256
    $region73: #{tpu_custom_call.1} parent=1 // pred_fallthru
      _
    %v119 = vld [vmem:[#allocation3] sm:$0xf]
    %v120 = vld [vmem:[#allocation6] sm:$0xf]
    %v121 = vld [vmem:[%s4] sm:$0xf]
    %v122 = vld [vmem:[%s4 + $0x4] sm:$0xf]
    %v123 = vld [vmem:[%s4 + $0x8] sm:$0xf]
    %v124 = vld [vmem:[%s4 + $0xc] sm:$0xf]
    %v125 = vld [vmem:[#allocation8] sm:$0xf]
    %v126 = vld [vmem:[#allocation8 + $0x4] sm:$0xf]
    %v127 = vld [vmem:[#allocation8 + $0x8] sm:$0xf]
    %v128 = vld [vmem:[#allocation8 + $0xc] sm:$0xf]
    %v133 = vunpack.c.l.b16 %v125
    %v134 = vunpack.c.l.b16 %v126
    %v135 = vunpack.c.l.b16 %v127
    %v136 = vunpack.c.l.b16 %v128
    %v137 = vpack.c.b16 %v134, %v133
    %v138 = vpack.c.b16 %v136, %v135
    %vm141 = vcmask 261120
    %v143 = vsel %vm141, %v119, 0
    %145 = vmatprep.subr.bf16.mxu0 0
    %146 = vmatpush1.bf16.msra.mxu0 %v137
    %147 = vmatprep.subr.bf16.mxu0 0
    %148 = vmatpush1.bf16.msra.mxu0 %v138
    %149 = vmatprep.subr.bf16.mxu0 0
    %150 = vmatpush1.bf16.msra.mxu0 0
    %151 = vmatprep.subr.bf16.mxu0 0
    %152 = vmatpush1.bf16.msra.mxu0 0
    %153 = vmatprep.subr.bf16.mxu0 0
    %154 = vmatpush1.bf16.msra.mxu0 0
    %155 = vmatprep.subr.bf16.mxu0 0
    %156 = vmatpush1.bf16.msra.mxu0 0
    %157 = vmatprep.subr.bf16.mxu0 0
    %158 = vmatpush1.bf16.msra.mxu0 0
    %159 = vmatprep.subr.bf16.mxu0 0
    %160 = vmatpush1.bf16.msra.mxu0 0
    %161 = vmatprep.subr.bf16.mxu0 0
    %162 = vmatpush1.bf16.msra.mxu0 0
    %163 = vmatprep.subr.bf16.mxu0 0
    %164 = vmatpush1.bf16.msra.mxu0 0
    %165 = vmatprep.subr.bf16.mxu0 0
    %166 = vmatpush1.bf16.msra.mxu0 0
    %167 = vmatprep.subr.bf16.mxu0 0
    %168 = vmatpush1.bf16.msra.mxu0 0
    %169 = vmatprep.subr.bf16.mxu0 0
    %170 = vmatpush1.bf16.msra.mxu0 0
    %171 = vmatprep.subr.bf16.mxu0 0
    %172 = vmatpush1.bf16.msra.mxu0 0
    %173 = vmatprep.subr.bf16.mxu0 0
    %174 = vmatpush1.bf16.msra.mxu0 0
    %175 = vmatprep.subr.bf16.mxu0 0
    %176 = vmatpush1.bf16.msra.mxu0 0
    %177 = vmatprep.mubr.bf16.mxu0 0
    %178 = vmatmul.mubr.bf16.gmra.mrb[0].mxu0 %v143
    %v179 = vpop.f32.mrb[0].mxu0
    %v180 = vadd.f32 0.0, %v179
    %v181 = vpop.f32.mrb[0].mxu0
    %v182 = vpop.f32.mrb[0].mxu0
    %v183 = vpop.f32.mrb[0].mxu0
    %184 = vdwg.mxu0
    %v189 = vunpack.c.l.b16 %v121
    %v190 = vunpack.c.l.b16 %v122
    %v191 = vunpack.c.l.b16 %v123
    %v192 = vunpack.c.l.b16 %v124
    %v193 = vpack.c.b16 %v190, %v189
    %v194 = vpack.c.b16 %v192, %v191
    %v198 = vsel %vm141, %v120, 0
    %200 = vmatprep.subr.bf16.mxu0 0
    %201 = vmatpush1.bf16.msra.mxu0 %v193
    %202 = vmatprep.subr.bf16.mxu0 0
    %203 = vmatpush1.bf16.msra.mxu0 %v194
    %204 = vmatprep.subr.bf16.mxu0 0
    %205 = vmatpush1.bf16.msra.mxu0 0
    %206 = vmatprep.subr.bf16.mxu0 0
    %207 = vmatpush1.bf16.msra.mxu0 0
    %208 = vmatprep.subr.bf16.mxu0 0
    %209 = vmatpush1.bf16.msra.mxu0 0
    %210 = vmatprep.subr.bf16.mxu0 0
    %211 = vmatpush1.bf16.msra.mxu0 0
    %212 = vmatprep.subr.bf16.mxu0 0
    %213 = vmatpush1.bf16.msra.mxu0 0
    %214 = vmatprep.subr.bf16.mxu0 0
    %215 = vmatpush1.bf16.msra.mxu0 0
    %216 = vmatprep.subr.bf16.mxu0 0
    %217 = vmatpush1.bf16.msra.mxu0 0
    %218 = vmatprep.subr.bf16.mxu0 0
    %219 = vmatpush1.bf16.msra.mxu0 0
    %220 = vmatprep.subr.bf16.mxu0 0
    %221 = vmatpush1.bf16.msra.mxu0 0
    %222 = vmatprep.subr.bf16.mxu0 0
    %223 = vmatpush1.bf16.msra.mxu0 0
    %224 = vmatprep.subr.bf16.mxu0 0
    %225 = vmatpush1.bf16.msra.mxu0 0
    %226 = vmatprep.subr.bf16.mxu0 0
    %227 = vmatpush1.bf16.msra.mxu0 0
    %228 = vmatprep.subr.bf16.mxu0 0
    %229 = vmatpush1.bf16.msra.mxu0 0
    %230 = vmatprep.subr.bf16.mxu0 0
    %231 = vmatpush1.bf16.msra.mxu0 0
    %232 = vmatprep.mubr.bf16.mxu0 0
    %233 = vmatmul.mubr.bf16.gmra.mrb[0].mxu0 %v198
    %v234 = vpop.f32.mrb[0].mxu0
    %v235 = vadd.f32 %v180, %v234
    %v236 = vpop.f32.mrb[0].mxu0
    %v237 = vpop.f32.mrb[0].mxu0
    %v238 = vpop.f32.mrb[0].mxu0
    %239 = vdwg.mxu0
    %v240 = vld [vmem:[#allocation9] sm:$0x1]
    %v242 = vlaneseq
    %v243 = vshrl.u32 %v242, 7
    %v244 = vsub.s32 0, %v243
    %v245 = vrot.slane %v240, %v244
    %v247 = vadd.f32 %v235, %v245
    %v248 = vxor.u32 %v247, 2147483648
    %v249 = vmul.f32 %v248, 1.442695
    %v250 = vpow.pop %v249
    %v251 = vadd.f32 %v250, 1.0
    %v252 = vrcp.pop %v251
    %v253 = vmul.f32 1.0, %v252
    %v254 = vld [vmem:[#allocation11] sm:$0x1]
    %v256 = vlaneseq
    %v257 = vshrl.u32 %v256, 7
    %v258 = vsub.s32 0, %v257
    %v259 = vrot.slane %v254, %v258
    %v261 = vmul.f32 %v253, %v259
    %v262 = vsel %vm141, %v261, 0.0
    %263 = vadd.xlane.f32.xlu0 %v262
    %v264 = vpop.xlane.xlu0 %263
    %v265 = vld [vmem:[#allocation2] sm:$0x1]
    %v267 = vlaneseq
    %v268 = vshrl.u32 %v267, 7
    %v269 = vsub.s32 0, %v268
    %v270 = vrot.slane %v265, %v269
    %v272 = vadd.f32 %v264, %v270
    %v273 = vunpack.c.l.bf16 %v119
    %275 = vset.pattern.permute.xlu0 0
    %276 = vperm.xlu0 %275, %v272
    %v277 = vpop.permute.xlu0 %276
    %v279 = vmul.f32 %v277, %v273
    %v280 = vpack.c.bf16 %v279, %v279
    %v281 = vld [vmem:[%s2] sm:$0x1]
    %vm282 = vcmask 64512
    %v284 = vsel %vm282, %v281, 0
    %vm286 = vcmask 1043456
    %v288 = vsel %vm286, %v280, 0
    %290 = vmatprep.subr.bf16.mxu0 0
    %291 = vmatpush1.bf16.msra.mxu0 %v288
    %292 = vmatprep.subr.bf16.mxu0 0
    %293 = vmatpush1.bf16.msra.mxu0 0
    %294 = vmatprep.subr.bf16.mxu0 0
    %295 = vmatpush1.bf16.msra.mxu0 0
    %296 = vmatprep.subr.bf16.mxu0 0
    %297 = vmatpush1.bf16.msra.mxu0 0
    %298 = vmatprep.subr.bf16.mxu0 0
    %299 = vmatpush1.bf16.msra.mxu0 0
    %300 = vmatprep.subr.bf16.mxu0 0
    %301 = vmatpush1.bf16.msra.mxu0 0
    %302 = vmatprep.subr.bf16.mxu0 0
    %303 = vmatpush1.bf16.msra.mxu0 0
    %304 = vmatprep.subr.bf16.mxu0 0
    %305 = vmatpush1.bf16.msra.mxu0 0
    %306 = vmatprep.subr.bf16.mxu0 0
    %307 = vmatpush1.bf16.msra.mxu0 0
    %308 = vmatprep.subr.bf16.mxu0 0
    %309 = vmatpush1.bf16.msra.mxu0 0
    %310 = vmatprep.subr.bf16.mxu0 0
    %311 = vmatpush1.bf16.msra.mxu0 0
    %312 = vmatprep.subr.bf16.mxu0 0
    %313 = vmatpush1.bf16.msra.mxu0 0
    %314 = vmatprep.subr.bf16.mxu0 0
    %315 = vmatpush1.bf16.msra.mxu0 0
    %316 = vmatprep.subr.bf16.mxu0 0
    %317 = vmatpush1.bf16.msra.mxu0 0
    %318 = vmatprep.subr.bf16.mxu0 0
    %319 = vmatpush1.bf16.msra.mxu0 0
    %320 = vmatprep.subr.bf16.mxu0 0
    %321 = vmatpush1.bf16.msra.mxu0 0
    %322 = vmatprep.mubr.bf16.mxu0 0
    %323 = vmatmul.mubr.bf16.gmra.mrb[0].mxu0 %v284
    %v324 = vpop.f32.mrb[0].mxu0
    %v325 = vadd.f32 0.0, %v324
    %v326 = vpop.f32.mrb[0].mxu0
    %v327 = vpop.f32.mrb[0].mxu0
    %v328 = vpop.f32.mrb[0].mxu0
    %329 = vdwg.mxu0
    %v330 = vld [vmem:[%s3] sm:$0x1]
    %v331 = vld [vmem:[%s9] sm:$0xf]
    %v332 = vld [vmem:[%s9 + $0x4] sm:$0xf]
    %v333 = vld [vmem:[%s9 + $0x8] sm:$0xf]
    %v334 = vld [vmem:[%s9 + $0xc] sm:$0xf]
    %v335 = vpack.c.bf16 %v325, %v325
    %v336 = vld [vmem:[#allocation12] sm:$0xf]
    %v337 = vld [vmem:[#allocation12 + $0x4] sm:$0xf]
    %v338 = vld [vmem:[#allocation12 + $0x8] sm:$0xf]
    %v339 = vld [vmem:[#allocation12 + $0xc] sm:$0xf]
    %v344 = vunpack.c.l.b16 %v336
    %v345 = vunpack.c.l.b16 %v337
    %v346 = vunpack.c.l.b16 %v338
    %v347 = vunpack.c.l.b16 %v339
    %v348 = vpack.c.b16 %v345, %v344
    %v349 = vpack.c.b16 %v347, %v346
    %v353 = vsel %vm141, %v335, 0
    %355 = vmatprep.subr.bf16.mxu0 0
    %356 = vmatpush1.bf16.msra.mxu0 %v348
    %357 = vmatprep.subr.bf16.mxu0 0
    %358 = vmatpush1.bf16.msra.mxu0 %v349
    %359 = vmatprep.subr.bf16.mxu0 0
    %360 = vmatpush1.bf16.msra.mxu0 0
    %361 = vmatprep.subr.bf16.mxu0 0
    %362 = vmatpush1.bf16.msra.mxu0 0
    %363 = vmatprep.subr.bf16.mxu0 0
    %364 = vmatpush1.bf16.msra.mxu0 0
    %365 = vmatprep.subr.bf16.mxu0 0
    %366 = vmatpush1.bf16.msra.mxu0 0
    %367 = vmatprep.subr.bf16.mxu0 0
    %368 = vmatpush1.bf16.msra.mxu0 0
    %369 = vmatprep.subr.bf16.mxu0 0
    %370 = vmatpush1.bf16.msra.mxu0 0
    %371 = vmatprep.subr.bf16.mxu0 0
    %372 = vmatpush1.bf16.msra.mxu0 0
    %373 = vmatprep.subr.bf16.mxu0 0
    %374 = vmatpush1.bf16.msra.mxu0 0
    %375 = vmatprep.subr.bf16.mxu0 0
    %376 = vmatpush1.bf16.msra.mxu0 0
    %377 = vmatprep.subr.bf16.mxu0 0
    %378 = vmatpush1.bf16.msra.mxu0 0
    %379 = vmatprep.subr.bf16.mxu0 0
    %380 = vmatpush1.bf16.msra.mxu0 0
    %381 = vmatprep.subr.bf16.mxu0 0
    %382 = vmatpush1.bf16.msra.mxu0 0
    %383 = vmatprep.subr.bf16.mxu0 0
    %384 = vmatpush1.bf16.msra.mxu0 0
    %385 = vmatprep.subr.bf16.mxu0 0
    %386 = vmatpush1.bf16.msra.mxu0 0
    %387 = vmatprep.mubr.bf16.mxu0 0
    %388 = vmatmul.mubr.bf16.gmra.mrb[0].mxu0 %v353
    %v389 = vpop.f32.mrb[0].mxu0
    %v390 = vadd.f32 0.0, %v389
    %v391 = vpop.f32.mrb[0].mxu0
    %v392 = vpop.f32.mrb[0].mxu0
    %v393 = vpop.f32.mrb[0].mxu0
    %394 = vdwg.mxu0
    %v399 = vunpack.c.l.b16 %v331
    %v400 = vunpack.c.l.b16 %v332
    %v401 = vunpack.c.l.b16 %v333
    %v402 = vunpack.c.l.b16 %v334
    %v403 = vpack.c.b16 %v400, %v399
    %v404 = vpack.c.b16 %v402, %v401
    %v408 = vsel %vm141, %v330, 0
    %410 = vmatprep.subr.bf16.mxu0 0
    %411 = vmatpush1.bf16.msra.mxu0 %v403
    %412 = vmatprep.subr.bf16.mxu0 0
    %413 = vmatpush1.bf16.msra.mxu0 %v404
    %414 = vmatprep.subr.bf16.mxu0 0
    %415 = vmatpush1.bf16.msra.mxu0 0
    %416 = vmatprep.subr.bf16.mxu0 0
    %417 = vmatpush1.bf16.msra.mxu0 0
    %418 = vmatprep.subr.bf16.mxu0 0
    %419 = vmatpush1.bf16.msra.mxu0 0
    %420 = vmatprep.subr.bf16.mxu0 0
    %421 = vmatpush1.bf16.msra.mxu0 0
    %422 = vmatprep.subr.bf16.mxu0 0
    %423 = vmatpush1.bf16.msra.mxu0 0
    %424 = vmatprep.subr.bf16.mxu0 0
    %425 = vmatpush1.bf16.msra.mxu0 0
    %426 = vmatprep.subr.bf16.mxu0 0
    %427 = vmatpush1.bf16.msra.mxu0 0
    %428 = vmatprep.subr.bf16.mxu0 0
    %429 = vmatpush1.bf16.msra.mxu0 0
    %430 = vmatprep.subr.bf16.mxu0 0
    %431 = vmatpush1.bf16.msra.mxu0 0
    %432 = vmatprep.subr.bf16.mxu0 0
    %433 = vmatpush1.bf16.msra.mxu0 0
    %434 = vmatprep.subr.bf16.mxu0 0
    %435 = vmatpush1.bf16.msra.mxu0 0
    %436 = vmatprep.subr.bf16.mxu0 0
    %437 = vmatpush1.bf16.msra.mxu0 0
    %438 = vmatprep.subr.bf16.mxu0 0
    %439 = vmatpush1.bf16.msra.mxu0 0
    %440 = vmatprep.subr.bf16.mxu0 0
    %441 = vmatpush1.bf16.msra.mxu0 0
    %442 = vmatprep.mubr.bf16.mxu0 0
    %443 = vmatmul.mubr.bf16.gmra.mrb[0].mxu0 %v408
    %v444 = vpop.f32.mrb[0].mxu0
    %v445 = vadd.f32 %v390, %v444
    %v446 = vpop.f32.mrb[0].mxu0
    %v447 = vpop.f32.mrb[0].mxu0
    %v448 = vpop.f32.mrb[0].mxu0
    %449 = vdwg.mxu0
    %v450 = vld [vmem:[%s11] sm:$0x1]
    %v452 = vlaneseq
    %v453 = vshrl.u32 %v452, 7
    %v454 = vsub.s32 0, %v453
    %v455 = vrot.slane %v450, %v454
    %v457 = vadd.f32 %v445, %v455
    %v458 = vpack.c.bf16 %v457, %v457
    %vm459 = vcmask 253952
    %460 = vst.msk [vmem:[#allocation14] sm:$0x1] %vm459, %v458
    // Predicated region
    $region74: #{tpu_custom_call.1} parent=1 // pred_check
      _
    $region75: #{tpu_custom_call.1} parent=1 // pred_check_branch
      %462 = sbr.rel (0) target = $region77
    $region76: #{tpu_custom_call.1} parent=1 // pred_region
      %s464 = ssub.s32 16, 16
      %465 = vsyncadd [#allocation5], %s464
      %s467 = sshll.u32 [#allocation14], 4
      %s468 = int_to_ptr.vmem [resolvable:$true] %s467
      %470 = dma.vmem_to_hbm [thread:$0]  %s468, 16, %s12, [#allocation5]
    $region77: #{tpu_custom_call.1} parent=1 // pred_fallthru
      _
    // Predicated region
    $region78: #{tpu_custom_call.1} parent=1 // pred_check
      _
    $region79: #{tpu_custom_call.1} parent=1 // pred_check_branch
      %472 = sbr.rel (0) target = $region81
    $region80: #{tpu_custom_call.1} parent=1 // pred_region
      %473 = dma.done [#allocation5], 16
    $region81: #{tpu_custom_call.1} parent=1 // pred_fallthru
      _
    %474 = vsyncpa [#allocation4], 1
    %475 = vsyncpa [#allocation7], 1
    %476 = vsyncpa [#allocation10], 1
    %477 = vsyncpa [#allocation13], 1
    %478 = vsyncpa [#allocation5], 1

</llo_original>
